<compile_context>
chip_gen: v7x
topology: tpu7x:2x2x1
jax: 0.10.0
libtpu: 0.0.40
codegen_flags: <defaults>
</compile_context>

<pallas_src>
import functools

import jax
import jax.numpy as jnp
from jax.experimental import pallas as pl
from jax.experimental.pallas import tpu as pltpu


def _round_up(x: int, m: int) -> int:
    return ((x + m - 1) // m) * m


def _logreg_kernel(x_ref, w1_ref, b1_ref, w2_ref, b2_ref, o_ref, *, compute_dtype):
    # Hidden layer: relu(x @ W1 + b1)   (MXU matmul, f32 accumulate)
    x = x_ref[...].astype(compute_dtype)
    w1 = w1_ref[...].astype(compute_dtype)
    h = jnp.dot(x, w1, preferred_element_type=jnp.float32)
    h = jnp.maximum(h + b1_ref[...], 0.0)          # bias broadcast + ReLU on VPU

    # Output layer: sigmoid(h @ W2 + b2)  (W2/b2 zero-padded to lane-dense width)
    w2 = w2_ref[...].astype(compute_dtype)
    z = jnp.dot(h.astype(compute_dtype), w2, preferred_element_type=jnp.float32)
    o_ref[...] = jax.nn.sigmoid(z + b2_ref[...]).astype(o_ref.dtype)


def logistic_regression_forward(x, w1, b1, w2, b2, *, block_b=512,
                                compute_dtype=jnp.float32):
    """x: (B, I) f32; w1: (I, H); b1: (H,); w2: (H, O); b2: (O,) -> (B, O) f32.

    Set compute_dtype=jnp.bfloat16 to run the matmuls with bf16 operands on the
    MXU (f32 accumulation) — faster on v6e/v7x if the accuracy budget allows.
    """
    B, I = x.shape
    H = w1.shape[1]
    O = w2.shape[1]

    # --- Lane-dense output: pad output features to a multiple of 128 so stores
    # are unmasked full-lane vst's. Padded columns (zero W2/b2) are sliced away.
    O_pad = _round_up(O, 128)
    if O_pad != O:
        w2 = jnp.pad(w2, ((0, 0), (0, O_pad - O)))
        b2 = jnp.pad(b2, (0, O_pad - O))

    # --- Batch tiling: tile rows in multiples of 8 (f32 sublane), capped at
    # block_b; pad the batch so it divides evenly. Weights stay resident.
    TB = min(block_b, _round_up(B, 8))
    B_pad = _round_up(B, TB)
    if B_pad != B:
        x = jnp.pad(x, ((0, B_pad - B), (0, 0)))

    # Biases as 2-D rows so they map cleanly onto (sublane, lane) tiles.
    b1_2d = b1.reshape(1, H)
    b2_2d = b2.reshape(1, O_pad)

    grid = (B_pad // TB,)

    cost = pl.CostEstimate(
        flops=2 * B_pad * (I * H + H * O_pad),
        transcendentals=B_pad * O_pad,               # sigmoid exp's
        bytes_accessed=4 * (B_pad * I + I * H + H + H * O_pad + O_pad
                            + B_pad * O_pad),
    )

    out = pl.pallas_call(
        functools.partial(_logreg_kernel, compute_dtype=compute_dtype),
        out_shape=jax.ShapeDtypeStruct((B_pad, O_pad), jnp.float32),
        grid_spec=pltpu.PrefetchScalarGridSpec(
            num_scalar_prefetch=0,
            grid=grid,
            in_specs=[
                pl.BlockSpec((TB, I), lambda i: (i, 0)),      # x: tiled over batch
                pl.BlockSpec((I, H), lambda i: (0, 0)),       # W1: resident
                pl.BlockSpec((1, H), lambda i: (0, 0)),       # b1: resident
                pl.BlockSpec((H, O_pad), lambda i: (0, 0)),   # W2: resident
                pl.BlockSpec((1, O_pad), lambda i: (0, 0)),   # b2: resident
            ],
            out_specs=pl.BlockSpec((TB, O_pad), lambda i: (i, 0)),
        ),
        compiler_params=pltpu.CompilerParams(
            # Batch tiles are independent -> shard across TCs on v7x megacore.
            dimension_semantics=("parallel",),
        ),
        cost_estimate=cost,
    )(x, w1, b1_2d, w2, b2_2d)

    # Strip batch padding and lane padding.
    return out[:B, :O]


def init_params(key, input_size, hidden_size, output_size):
    """Deterministic init mimicking torch.nn.Linear default (U(-1/sqrt(fan_in), +)),
    stored as (in_features, out_features) for direct x @ W."""
    k1, k2, k3, k4 = jax.random.split(key, 4)
    lim1 = 1.0 / jnp.sqrt(jnp.float32(input_size))
    lim2 = 1.0 / jnp.sqrt(jnp.float32(hidden_size))
    w1 = jax.random.uniform(k1, (input_size, hidden_size), jnp.float32, -lim1, lim1)
    b1 = jax.random.uniform(k2, (hidden_size,), jnp.float32, -lim1, lim1)
    w2 = jax.random.uniform(k3, (hidden_size, output_size), jnp.float32, -lim2, lim2)
    b2 = jax.random.uniform(k4, (output_size,), jnp.float32, -lim2, lim2)
    return w1, b1, w2, b2


if __name__ == "__main__":
    # Small shapes consistent with the module's forward: (batch, input_size).
    # Batch > one tile-row group so the batch grid / padding paths are exercised.
    batch, input_size, hidden_size, output_size = 64, 32, 32, 8

    key = jax.random.PRNGKey(0)
    kx, kp = jax.random.split(key)
    x = jax.random.normal(kx, (batch, input_size), jnp.float32)
    w1, b1, w2, b2 = init_params(kp, input_size, hidden_size, output_size)

    out = logistic_regression_forward(x, w1, b1, w2, b2)
    out = jax.block_until_ready(out)

    # Reference check in plain JAX (same math as the PyTorch forward).
    ref = jax.nn.sigmoid(jnp.maximum(x @ w1 + b1, 0.0) @ w2 + b2)
    assert out.shape == (batch, output_size)
    assert jnp.allclose(out, ref, atol=1e-5, rtol=1e-5)

    # TODO(synk): the module's save() (torch state_dict checkpointing) is host-side
    # I/O with no Pallas equivalent; omitted.

    print("KERNEL_OK")
</pallas_src>

<mosaic_0001>
module attributes {stable_mosaic.version = 11 : i64} {
  func.func @_logreg_kernel(%arg0: i32, %arg1: memref<64x32xf32, #tpu.memory_space<vmem>>, %arg2: memref<32x32xf32, #tpu.memory_space<vmem>>, %arg3: memref<1x32xf32, #tpu.memory_space<vmem>>, %arg4: memref<32x128xf32, #tpu.memory_space<vmem>>, %arg5: memref<1x128xf32, #tpu.memory_space<vmem>>, %arg6: memref<64x128xf32, #tpu.memory_space<vmem>>) attributes {dimension_semantics = [#tpu.dimension_semantics<parallel>], iteration_bounds = array<i64: 1>, scalar_prefetch = 0 : i64, scratch_operands = 0 : i64, tpu.core_type = #tpu.core_type<tc>, window_params = [{transform_indices = @transform_0, window_bounds = array<i64: 64, 32>}, {pipeline_mode = #tpu.pipeline_mode<synchronous>, transform_indices = @transform_1, window_bounds = array<i64: 32, 32>}, {pipeline_mode = #tpu.pipeline_mode<synchronous>, transform_indices = @transform_2, window_bounds = array<i64: 1, 32>}, {pipeline_mode = #tpu.pipeline_mode<synchronous>, transform_indices = @transform_3, window_bounds = array<i64: 32, 128>}, {pipeline_mode = #tpu.pipeline_mode<synchronous>, transform_indices = @transform_4, window_bounds = array<i64: 1, 128>}, {transform_indices = @transform_5, window_bounds = array<i64: 64, 128>}]} {
    %c0 = arith.constant 0 : index
    %c0_0 = arith.constant 0 : index
    %0 = vector.load %arg1[%c0, %c0_0] : memref<64x32xf32, #tpu.memory_space<vmem>>, vector<64x32xf32>
    %c0_1 = arith.constant 0 : index
    %c0_2 = arith.constant 0 : index
    %1 = vector.load %arg2[%c0_1, %c0_2] : memref<32x32xf32, #tpu.memory_space<vmem>>, vector<32x32xf32>
    %cst = arith.constant dense<0.000000e+00> : vector<64x32xf32>
    %2 = tpu.matmul %0, %1, %cst {dimension_numbers = #tpu.dot_dimension_numbers<[1], [0], [0], [1], [0, 0, 1, 1], [], []>} : vector<64x32xf32>, vector<32x32xf32>, vector<64x32xf32> -> vector<64x32xf32>
    %c0_3 = arith.constant 0 : index
    %c0_4 = arith.constant 0 : index
    %3 = vector.load %arg3[%c0_3, %c0_4] : memref<1x32xf32, #tpu.memory_space<vmem>>, vector<1x32xf32>
    %4 = vector.broadcast %3 : vector<1x32xf32> to vector<64x32xf32>
    %5 = arith.addf %2, %4 : vector<64x32xf32>
    %cst_5 = arith.constant 0.000000e+00 : f32
    %6 = vector.broadcast %cst_5 : f32 to vector<64x32xf32>
    %7 = arith.maximumf %5, %6 : vector<64x32xf32>
    %c0_6 = arith.constant 0 : index
    %c0_7 = arith.constant 0 : index
    %8 = vector.load %arg4[%c0_6, %c0_7] : memref<32x128xf32, #tpu.memory_space<vmem>>, vector<32x128xf32>
    %cst_8 = arith.constant dense<0.000000e+00> : vector<64x128xf32>
    %9 = tpu.matmul %7, %8, %cst_8 {dimension_numbers = #tpu.dot_dimension_numbers<[1], [0], [0], [1], [0, 0, 1, 1], [], []>} : vector<64x32xf32>, vector<32x128xf32>, vector<64x128xf32> -> vector<64x128xf32>
    %c0_9 = arith.constant 0 : index
    %c0_10 = arith.constant 0 : index
    %10 = vector.load %arg5[%c0_9, %c0_10] : memref<1x128xf32, #tpu.memory_space<vmem>>, vector<1x128xf32>
    %11 = vector.broadcast %10 : vector<1x128xf32> to vector<64x128xf32>
    %12 = arith.addf %9, %11 : vector<64x128xf32>
    %13 = arith.negf %12 : vector<64x128xf32>
    %14 = math.exp %13 : vector<64x128xf32>
    %cst_11 = arith.constant 1.000000e+00 : f32
    %15 = vector.broadcast %cst_11 : f32 to vector<64x128xf32>
    %16 = arith.addf %15, %14 : vector<64x128xf32>
    %17 = arith.divf %15, %16 : vector<64x128xf32>
    %c0_12 = arith.constant 0 : index
    %c0_13 = arith.constant 0 : index
    %18 = vector.load %arg6[%c0_12, %c0_13] : memref<64x128xf32, #tpu.memory_space<vmem>>, vector<64x128xf32>
    tpu.vector_store %arg6[%c0_12, %c0_13], %17 {strides = array<i32>} : memref<64x128xf32, #tpu.memory_space<vmem>>, vector<64x128xf32>,
    return
  }
  func.func @transform_0(%arg0: i32) -> (i32, i32) {
    %c0_i32 = arith.constant 0 : i32
    %c0_i32_0 = arith.constant 0 : i32
    return %arg0, %c0_i32 : i32, i32
  }
  func.func @transform_1(%arg0: i32) -> (i32, i32) {
    %c0_i32 = arith.constant 0 : i32
    %c0_i32_0 = arith.constant 0 : i32
    %c0_i32_1 = arith.constant 0 : i32
    return %c0_i32, %c0_i32_0 : i32, i32
  }
  func.func @transform_2(%arg0: i32) -> (i32, i32) {
    %c0_i32 = arith.constant 0 : i32
    %c0_i32_0 = arith.constant 0 : i32
    %c0_i32_1 = arith.constant 0 : i32
    return %c0_i32, %c0_i32_0 : i32, i32
  }
  func.func @transform_3(%arg0: i32) -> (i32, i32) {
    %c0_i32 = arith.constant 0 : i32
    %c0_i32_0 = arith.constant 0 : i32
    %c0_i32_1 = arith.constant 0 : i32
    return %c0_i32, %c0_i32_0 : i32, i32
  }
  func.func @transform_4(%arg0: i32) -> (i32, i32) {
    %c0_i32 = arith.constant 0 : i32
    %c0_i32_0 = arith.constant 0 : i32
    %c0_i32_1 = arith.constant 0 : i32
    return %c0_i32, %c0_i32_0 : i32, i32
  }
  func.func @transform_5(%arg0: i32) -> (i32, i32) {
    %c0_i32 = arith.constant 0 : i32
    %c0_i32_0 = arith.constant 0 : i32
    return %arg0, %c0_i32 : i32, i32
  }
}

</mosaic_0001>

<llo_original>
// kernel: tpu_custom_call.1
$region0: #{tpu_custom_call.1}
  #allocation0 [shape = 'u32[]', space=smem, size = 0x4, offset = 0x4, fixed_abs, tag = 'smem constant byte address 0x4 - core index']
  #allocation1 [shape = 'u32[144,128]{1,0:T(1,128)}', space=vmem, size = 0x12000, scoped, tag = 'internal scratch']
  %s0 = inlined_call_operand.vmem [shape: f32[64,32], index: 0, kind: input, shape index: {}]
  %s1 = inlined_call_operand.vmem [shape: f32[32,32], index: 1, kind: input, shape index: {}]
  %s2 = inlined_call_operand.vmem [shape: f32[1,32], index: 2, kind: input, shape index: {}]
  %s3 = inlined_call_operand.vmem [shape: f32[32,128], index: 3, kind: input, shape index: {}]
  %s4 = inlined_call_operand.vmem [shape: f32[1,128], index: 4, kind: input, shape index: {}]
  %s5 = inlined_call_operand.hbm [shape: f32[64,128], index: 5, kind: output, shape index: {}]
  %s6 = sld [smem:[#allocation0]]
  $region30: #{tpu_custom_call.1} parent=0
    _
  %s8 = ssub.s32 1, %s6
  %s9 = scalar_select 0, %s8, %s6
  $region1: #{tpu_custom_call.1} parent=0
    #allocation2 [shape = 'u8[32768]{0}', space=vmem, size = 0x8000, scoped, tag = 'output window, operand 0, single buffered']
    #allocation3 [shape = 's32[1]{0}', space=sflag, size = 0x4, scoped, tag = 'scoped memory for tpu_custom_call.1']
    %10 = vsyncpa [#allocation3], 0
    // Predicated region
    $region2: #{tpu_custom_call.1} parent=1 // pred_check
      _
    $region3: #{tpu_custom_call.1} parent=1 // pred_check_branch
      %12 = sbr.rel (0) target = $region5
    $region4: #{tpu_custom_call.1} parent=1 // pred_region
      _
    $region5: #{tpu_custom_call.1} parent=1 // pred_fallthru
      _
    // Predicated region
    $region6: #{tpu_custom_call.1} parent=1 // pred_check
      _
    $region7: #{tpu_custom_call.1} parent=1 // pred_check_branch
      %14 = sbr.rel (0) target = $region9
    $region8: #{tpu_custom_call.1} parent=1 // pred_region
      _
    $region9: #{tpu_custom_call.1} parent=1 // pred_fallthru
      _
    // Predicated region
    $region10: #{tpu_custom_call.1} parent=1 // pred_check
      _
    $region11: #{tpu_custom_call.1} parent=1 // pred_check_branch
      %16 = sbr.rel (0) target = $region13
    $region12: #{tpu_custom_call.1} parent=1 // pred_region
      _
    $region13: #{tpu_custom_call.1} parent=1 // pred_fallthru
      _
    // Predicated region
    $region14: #{tpu_custom_call.1} parent=1 // pred_check
      _
    $region15: #{tpu_custom_call.1} parent=1 // pred_check_branch
      %18 = sbr.rel (0) target = $region17
    $region16: #{tpu_custom_call.1} parent=1 // pred_region
      _
    $region17: #{tpu_custom_call.1} parent=1 // pred_fallthru
      _
    // Predicated region
    $region18: #{tpu_custom_call.1} parent=1 // pred_check
      _
    $region19: #{tpu_custom_call.1} parent=1 // pred_check_branch
      %20 = sbr.rel (0) target = $region21
    $region20: #{tpu_custom_call.1} parent=1 // pred_region
      _
    $region21: #{tpu_custom_call.1} parent=1 // pred_fallthru
      _
    %v21 = vld [vmem:[%s0] sm:$0xff]
    %v22 = vld [vmem:[%s0 + $0x8] sm:$0xff]
    %v23 = vld [vmem:[%s0 + $0x10] sm:$0xff]
    %v24 = vld [vmem:[%s0 + $0x18] sm:$0xff]
    %v25 = vld [vmem:[%s0 + $0x20] sm:$0xff]
    %v26 = vld [vmem:[%s0 + $0x28] sm:$0xff]
    %v27 = vld [vmem:[%s0 + $0x30] sm:$0xff]
    %v28 = vld [vmem:[%s0 + $0x38] sm:$0xff]
    %v29 = vld [vmem:[%s1] sm:$0xff]
    %v30 = vld [vmem:[%s1 + $0x8] sm:$0xff]
    %v31 = vld [vmem:[%s1 + $0x10] sm:$0xff]
    %v32 = vld [vmem:[%s1 + $0x18] sm:$0xff]
    %v33 = vld [vmem:[%s2] sm:$0x1]
    %v35 = vlaneseq
    %v36 = vshrl.u32 %v35, 7
    %v37 = vsub.s32 0, %v36
    %v38 = vrot.slane %v33, %v37
    %vm40 = vcmask 261120
    %v42 = vsel %vm40, %v21, 0
    %v45 = vsel %vm40, %v22, 0
    %v48 = vsel %vm40, %v23, 0
    %v51 = vsel %vm40, %v24, 0
    %v54 = vsel %vm40, %v25, 0
    %v57 = vsel %vm40, %v26, 0
    %v60 = vsel %vm40, %v27, 0
    %v63 = vsel %vm40, %v28, 0
    %65 = vmatprep.subr.mxu0 0.0
    %66 = vmatpush1.msra.mxu0 %v29
    %67 = vmatprep.subr.mxu0 0.0
    %68 = vmatpush1.msra.mxu0 %v30
    %69 = vmatprep.subr.mxu0 0.0
    %70 = vmatpush1.msra.mxu0 %v31
    %71 = vmatprep.subr.mxu0 0.0
    %72 = vmatpush1.msra.mxu0 %v32
    %73 = vmatprep.subr.mxu0 0.0
    %74 = vmatpush1.msra.mxu0 0.0
    %75 = vmatprep.subr.mxu0 0.0
    %76 = vmatpush1.msra.mxu0 0.0
    %77 = vmatprep.subr.mxu0 0.0
    %78 = vmatpush1.msra.mxu0 0.0
    %79 = vmatprep.subr.mxu0 0.0
    %80 = vmatpush1.msra.mxu0 0.0
    %81 = vmatprep.subr.mxu0 0.0
    %82 = vmatpush1.msra.mxu0 0.0
    %83 = vmatprep.subr.mxu0 0.0
    %84 = vmatpush1.msra.mxu0 0.0
    %85 = vmatprep.subr.mxu0 0.0
    %86 = vmatpush1.msra.mxu0 0.0
    %87 = vmatprep.subr.mxu0 0.0
    %88 = vmatpush1.msra.mxu0 0.0
    %89 = vmatprep.subr.mxu0 0.0
    %90 = vmatpush1.msra.mxu0 0.0
    %91 = vmatprep.subr.mxu0 0.0
    %92 = vmatpush1.msra.mxu0 0.0
    %93 = vmatprep.subr.mxu0 0.0
    %94 = vmatpush1.msra.mxu0 0.0
    %95 = vmatprep.subr.mxu0 0.0
    %96 = vmatpush1.msra.mxu0 0.0
    %97 = vmatprep.subr.mxu0 0.0
    %98 = vmatpush1.msra.mxu0 0.0
    %99 = vmatprep.subr.mxu0 0.0
    %100 = vmatpush1.msra.mxu0 0.0
    %101 = vmatprep.subr.mxu0 0.0
    %102 = vmatpush1.msra.mxu0 0.0
    %103 = vmatprep.subr.mxu0 0.0
    %104 = vmatpush1.msra.mxu0 0.0
    %105 = vmatprep.subr.mxu0 0.0
    %106 = vmatpush1.msra.mxu0 0.0
    %107 = vmatprep.subr.mxu0 0.0
    %108 = vmatpush1.msra.mxu0 0.0
    %109 = vmatprep.subr.mxu0 0.0
    %110 = vmatpush1.msra.mxu0 0.0
    %111 = vmatprep.subr.mxu0 0.0
    %112 = vmatpush1.msra.mxu0 0.0
    %113 = vmatprep.subr.mxu0 0.0
    %114 = vmatpush1.msra.mxu0 0.0
    %115 = vmatprep.subr.mxu0 0.0
    %116 = vmatpush1.msra.mxu0 0.0
    %117 = vmatprep.subr.mxu0 0.0
    %118 = vmatpush1.msra.mxu0 0.0
    %119 = vmatprep.subr.mxu0 0.0
    %120 = vmatpush1.msra.mxu0 0.0
    %121 = vmatprep.subr.mxu0 0.0
    %122 = vmatpush1.msra.mxu0 0.0
    %123 = vmatprep.subr.mxu0 0.0
    %124 = vmatpush1.msra.mxu0 0.0
    %125 = vmatprep.subr.mxu0 0.0
    %126 = vmatpush1.msra.mxu0 0.0
    %127 = vmatprep.subr.mxu0 0.0
    %128 = vmatpush1.msra.mxu0 0.0
    %129 = vmatprep.mubr.f32.mxu0 0.0
    %130 = vmatmul.mubr.f32.gmra.mrb[0].mxu0 %v42
    %v131 = vpop.f32.mrb[0].mxu0
    %v132 = vadd.f32 %v38, %v131
    %v133 = vpop.f32.mrb[0].mxu0
    %134 = vmatprep.mubr.f32.mxu0 0.0
    %135 = vmatmul.mubr.f32.gmra.mrb[0].mxu0 %v45
    %v136 = vpop.f32.mrb[0].mxu0
    %v137 = vadd.f32 %v38, %v136
    %v138 = vpop.f32.mrb[0].mxu0
    %139 = vmatprep.mubr.f32.mxu0 0.0
    %140 = vmatmul.mubr.f32.gmra.mrb[0].mxu0 %v48
    %v141 = vpop.f32.mrb[0].mxu0
    %v142 = vadd.f32 %v38, %v141
    %v143 = vpop.f32.mrb[0].mxu0
    %144 = vmatprep.mubr.f32.mxu0 0.0
    %145 = vmatmul.mubr.f32.gmra.mrb[0].mxu0 %v51
    %v146 = vpop.f32.mrb[0].mxu0
    %v147 = vadd.f32 %v38, %v146
    %v148 = vpop.f32.mrb[0].mxu0
    %149 = vmatprep.mubr.f32.mxu0 0.0
    %150 = vmatmul.mubr.f32.gmra.mrb[0].mxu0 %v54
    %v151 = vpop.f32.mrb[0].mxu0
    %v152 = vadd.f32 %v38, %v151
    %v153 = vpop.f32.mrb[0].mxu0
    %154 = vmatprep.mubr.f32.mxu0 0.0
    %155 = vmatmul.mubr.f32.gmra.mrb[0].mxu0 %v57
    %v156 = vpop.f32.mrb[0].mxu0
    %v157 = vadd.f32 %v38, %v156
    %v158 = vpop.f32.mrb[0].mxu0
    %159 = vmatprep.mubr.f32.mxu0 0.0
    %160 = vmatmul.mubr.f32.gmra.mrb[0].mxu0 %v60
    %v161 = vpop.f32.mrb[0].mxu0
    %v162 = vadd.f32 %v38, %v161
    %v163 = vpop.f32.mrb[0].mxu0
    %164 = vmatprep.mubr.f32.mxu0 0.0
    %165 = vmatmul.mubr.f32.gmra.mrb[0].mxu0 %v63
    %v166 = vpop.f32.mrb[0].mxu0
    %v167 = vadd.f32 %v38, %v166
    %v168 = vpop.f32.mrb[0].mxu0
    %169 = vdwg.mxu0
    %v170 = vmax.f32 %v132, 0.0
    %v171 = vmax.f32 %v137, 0.0
    %v172 = vmax.f32 %v142, 0.0
    %v173 = vmax.f32 %v147, 0.0
    %v174 = vmax.f32 %v152, 0.0
    %v175 = vmax.f32 %v157, 0.0
    %v176 = vmax.f32 %v162, 0.0
    %v177 = vmax.f32 %v167, 0.0
    %v178 = vld [vmem:[%s3] sm:$0xff]
    %v179 = vld [vmem:[%s3 + $0x8] sm:$0xff]
    %v180 = vld [vmem:[%s3 + $0x10] sm:$0xff]
    %v181 = vld [vmem:[%s3 + $0x18] sm:$0xff]
    %v182 = vld [vmem:[%s4] sm:$0x1]
    %v184 = vlaneseq
    %v185 = vshrl.u32 %v184, 7
    %v186 = vsub.s32 0, %v185
    %v187 = vrot.slane %v182, %v186
    %v190 = vsel %vm40, %v170, 0
    %v193 = vsel %vm40, %v171, 0
    %v196 = vsel %vm40, %v172, 0
    %v199 = vsel %vm40, %v173, 0
    %v202 = vsel %vm40, %v174, 0
    %v205 = vsel %vm40, %v175, 0
    %v208 = vsel %vm40, %v176, 0
    %v211 = vsel %vm40, %v177, 0
    %213 = vmatprep.subr.mxu0 0.0
    %214 = vmatpush1.msra.mxu0 %v178
    %215 = vmatprep.subr.mxu0 0.0
    %216 = vmatpush1.msra.mxu0 %v179
    %217 = vmatprep.subr.mxu0 0.0
    %218 = vmatpush1.msra.mxu0 %v180
    %219 = vmatprep.subr.mxu0 0.0
    %220 = vmatpush1.msra.mxu0 %v181
    %221 = vmatprep.subr.mxu0 0.0
    %222 = vmatpush1.msra.mxu0 0.0
    %223 = vmatprep.subr.mxu0 0.0
    %224 = vmatpush1.msra.mxu0 0.0
    %225 = vmatprep.subr.mxu0 0.0
    %226 = vmatpush1.msra.mxu0 0.0
    %227 = vmatprep.subr.mxu0 0.0
    %228 = vmatpush1.msra.mxu0 0.0
    %229 = vmatprep.subr.mxu0 0.0
    %230 = vmatpush1.msra.mxu0 0.0
    %231 = vmatprep.subr.mxu0 0.0
    %232 = vmatpush1.msra.mxu0 0.0
    %233 = vmatprep.subr.mxu0 0.0
    %234 = vmatpush1.msra.mxu0 0.0
    %235 = vmatprep.subr.mxu0 0.0
    %236 = vmatpush1.msra.mxu0 0.0
    %237 = vmatprep.subr.mxu0 0.0
    %238 = vmatpush1.msra.mxu0 0.0
    %239 = vmatprep.subr.mxu0 0.0
    %240 = vmatpush1.msra.mxu0 0.0
    %241 = vmatprep.subr.mxu0 0.0
    %242 = vmatpush1.msra.mxu0 0.0
    %243 = vmatprep.subr.mxu0 0.0
    %244 = vmatpush1.msra.mxu0 0.0
    %245 = vmatprep.subr.mxu0 0.0
    %246 = vmatpush1.msra.mxu0 0.0
    %247 = vmatprep.subr.mxu0 0.0
    %248 = vmatpush1.msra.mxu0 0.0
    %249 = vmatprep.subr.mxu0 0.0
    %250 = vmatpush1.msra.mxu0 0.0
    %251 = vmatprep.subr.mxu0 0.0
    %252 = vmatpush1.msra.mxu0 0.0
    %253 = vmatprep.subr.mxu0 0.0
    %254 = vmatpush1.msra.mxu0 0.0
    %255 = vmatprep.subr.mxu0 0.0
    %256 = vmatpush1.msra.mxu0 0.0
    %257 = vmatprep.subr.mxu0 0.0
    %258 = vmatpush1.msra.mxu0 0.0
    %259 = vmatprep.subr.mxu0 0.0
    %260 = vmatpush1.msra.mxu0 0.0
    %261 = vmatprep.subr.mxu0 0.0
    %262 = vmatpush1.msra.mxu0 0.0
    %263 = vmatprep.subr.mxu0 0.0
    %264 = vmatpush1.msra.mxu0 0.0
    %265 = vmatprep.subr.mxu0 0.0
    %266 = vmatpush1.msra.mxu0 0.0
    %267 = vmatprep.subr.mxu0 0.0
    %268 = vmatpush1.msra.mxu0 0.0
    %269 = vmatprep.subr.mxu0 0.0
    %270 = vmatpush1.msra.mxu0 0.0
    %271 = vmatprep.subr.mxu0 0.0
    %272 = vmatpush1.msra.mxu0 0.0
    %273 = vmatprep.subr.mxu0 0.0
    %274 = vmatpush1.msra.mxu0 0.0
    %275 = vmatprep.subr.mxu0 0.0
    %276 = vmatpush1.msra.mxu0 0.0
    %277 = vmatprep.mubr.f32.mxu0 0.0
    %278 = vmatmul.mubr.f32.gmra.mrb[0].mxu0 %v190
    %v279 = vpop.f32.mrb[0].mxu0
    %v280 = vadd.f32 %v187, %v279
    %v281 = vpop.f32.mrb[0].mxu0
    %282 = vmatprep.mubr.f32.mxu0 0.0
    %283 = vmatmul.mubr.f32.gmra.mrb[0].mxu0 %v193
    %v284 = vpop.f32.mrb[0].mxu0
    %v285 = vadd.f32 %v187, %v284
    %v286 = vpop.f32.mrb[0].mxu0
    %287 = vmatprep.mubr.f32.mxu0 0.0
    %288 = vmatmul.mubr.f32.gmra.mrb[0].mxu0 %v196
    %v289 = vpop.f32.mrb[0].mxu0
    %v290 = vadd.f32 %v187, %v289
    %v291 = vpop.f32.mrb[0].mxu0
    %292 = vmatprep.mubr.f32.mxu0 0.0
    %293 = vmatmul.mubr.f32.gmra.mrb[0].mxu0 %v199
    %v294 = vpop.f32.mrb[0].mxu0
    %v295 = vadd.f32 %v187, %v294
    %v296 = vpop.f32.mrb[0].mxu0
    %297 = vmatprep.mubr.f32.mxu0 0.0
    %298 = vmatmul.mubr.f32.gmra.mrb[0].mxu0 %v202
    %v299 = vpop.f32.mrb[0].mxu0
    %v300 = vadd.f32 %v187, %v299
    %v301 = vpop.f32.mrb[0].mxu0
    %302 = vmatprep.mubr.f32.mxu0 0.0
    %303 = vmatmul.mubr.f32.gmra.mrb[0].mxu0 %v205
    %v304 = vpop.f32.mrb[0].mxu0
    %v305 = vadd.f32 %v187, %v304
    %v306 = vpop.f32.mrb[0].mxu0
    %307 = vmatprep.mubr.f32.mxu0 0.0
    %308 = vmatmul.mubr.f32.gmra.mrb[0].mxu0 %v208
    %v309 = vpop.f32.mrb[0].mxu0
    %v310 = vadd.f32 %v187, %v309
    %v311 = vpop.f32.mrb[0].mxu0
    %312 = vmatprep.mubr.f32.mxu0 0.0
    %313 = vmatmul.mubr.f32.gmra.mrb[0].mxu0 %v211
    %v314 = vpop.f32.mrb[0].mxu0
    %v315 = vadd.f32 %v187, %v314
    %v316 = vpop.f32.mrb[0].mxu0
    %317 = vdwg.mxu0
    %v318 = vxor.u32 %v280, 2147483648
    %v319 = vxor.u32 %v285, 2147483648
    %v320 = vxor.u32 %v290, 2147483648
    %v321 = vxor.u32 %v295, 2147483648
    %v322 = vxor.u32 %v300, 2147483648
    %v323 = vxor.u32 %v305, 2147483648
    %v324 = vxor.u32 %v310, 2147483648
    %v325 = vxor.u32 %v315, 2147483648
    %v326 = vmul.f32 %v318, 1.442695
    %v327 = vpow.pop %v326
    %v328 = vmul.f32 %v319, 1.442695
    %v329 = vpow.pop %v328
    %v330 = vmul.f32 %v320, 1.442695
    %v331 = vpow.pop %v330
    %v332 = vmul.f32 %v321, 1.442695
    %v333 = vpow.pop %v332
    %v334 = vmul.f32 %v322, 1.442695
    %v335 = vpow.pop %v334
    %v336 = vmul.f32 %v323, 1.442695
    %v337 = vpow.pop %v336
    %v338 = vmul.f32 %v324, 1.442695
    %v339 = vpow.pop %v338
    %v340 = vmul.f32 %v325, 1.442695
    %v341 = vpow.pop %v340
    %v342 = vadd.f32 %v327, 1.0
    %v343 = vadd.f32 %v329, 1.0
    %v344 = vadd.f32 %v331, 1.0
    %v345 = vadd.f32 %v333, 1.0
    %v346 = vadd.f32 %v335, 1.0
    %v347 = vadd.f32 %v337, 1.0
    %v348 = vadd.f32 %v339, 1.0
    %v349 = vadd.f32 %v341, 1.0
    %v350 = vrcp.pop %v342
    %v351 = vmul.f32 1.0, %v350
    %v352 = vrcp.pop %v343
    %v353 = vmul.f32 1.0, %v352
    %v354 = vrcp.pop %v344
    %v355 = vmul.f32 1.0, %v354
    %v356 = vrcp.pop %v345
    %v357 = vmul.f32 1.0, %v356
    %v358 = vrcp.pop %v346
    %v359 = vmul.f32 1.0, %v358
    %v360 = vrcp.pop %v347
    %v361 = vmul.f32 1.0, %v360
    %v362 = vrcp.pop %v348
    %v363 = vmul.f32 1.0, %v362
    %v364 = vrcp.pop %v349
    %v365 = vmul.f32 1.0, %v364
    %366 = vst [vmem:[#allocation2] sm:$0xff] %v351
    %367 = vst [vmem:[#allocation2 + $0x8] sm:$0xff] %v353
    %368 = vst [vmem:[#allocation2 + $0x10] sm:$0xff] %v355
    %369 = vst [vmem:[#allocation2 + $0x18] sm:$0xff] %v357
    %370 = vst [vmem:[#allocation2 + $0x20] sm:$0xff] %v359
    %371 = vst [vmem:[#allocation2 + $0x28] sm:$0xff] %v361
    %372 = vst [vmem:[#allocation2 + $0x30] sm:$0xff] %v363
    %373 = vst [vmem:[#allocation2 + $0x38] sm:$0xff] %v365
    // Predicated region
    $region22: #{tpu_custom_call.1} parent=1 // pred_check
      _
    $region23: #{tpu_custom_call.1} parent=1 // pred_check_branch
      %375 = sbr.rel (0) target = $region25
    $region24: #{tpu_custom_call.1} parent=1 // pred_region
      %s377 = ssub.s32 1024, 1024
      %378 = vsyncadd [#allocation3], %s377
      %s379 = sshll.u32 [#allocation2], 4
      %s380 = int_to_ptr.vmem [resolvable:$true] %s379
      %385 = dma.vmem_to_hbm [thread:$0]  %s380, 1024, %s5, [#allocation3], 128, 128, 8
    $region25: #{tpu_custom_call.1} parent=1 // pred_fallthru
      _
    // Predicated region
    $region26: #{tpu_custom_call.1} parent=1 // pred_check
      _
    $region27: #{tpu_custom_call.1} parent=1 // pred_check_branch
      %387 = sbr.rel (0) target = $region29
    $region28: #{tpu_custom_call.1} parent=1 // pred_region
      %388 = dma.done [#allocation3], 1024
    $region29: #{tpu_custom_call.1} parent=1 // pred_fallthru
      _
    %389 = vsyncpa [#allocation3], 1

</llo_original>
